<compile_context>
chip_gen: v6e
topology: v6e:2x2x1
jax: 0.10.0
libtpu: 0.0.40
codegen_flags: <defaults>
</compile_context>

<pallas_src>
import functools

import numpy as np

import jax
import jax.numpy as jnp
from jax.experimental import pallas as pl
from jax.experimental.pallas import tpu as pltpu


def _upsample_kernel(x_ref, m_ref, o_ref, *, n_passes):
    """o = x @ m ; m has one-hot columns, so this is an exact gather/replicate."""
    m = m_ref[...]                                   # (K, N) bf16, entries in {0,1}
    if n_passes == 1:
        # bf16 input: single MXU pass, bit-exact (one nonzero weight per column,
        # f32 accumulation).
        acc = jnp.dot(x_ref[...], m, preferred_element_type=jnp.float32)
    else:
        # f32 (or upcast) input: exact 3-way split into bf16-representable
        # addends (truncate-top-16-bits trick); every partial matmul is exact
        # and their f32 sum reconstructs x exactly.
        x = x_ref[...]
        mask = jnp.uint32(0xFFFF0000)
        hi = pltpu.bitcast(pltpu.bitcast(x, jnp.uint32) & mask, jnp.float32)
        rem = x - hi
        mid = pltpu.bitcast(pltpu.bitcast(rem, jnp.uint32) & mask, jnp.float32)
        lo = rem - mid
        acc = jnp.dot(hi.astype(jnp.bfloat16), m, preferred_element_type=jnp.float32)
        acc = acc + jnp.dot(mid.astype(jnp.bfloat16), m, preferred_element_type=jnp.float32)
        acc = acc + jnp.dot(lo.astype(jnp.bfloat16), m, preferred_element_type=jnp.float32)
    o_ref[...] = acc.astype(o_ref.dtype)


def _pack_factor(rows, w, s):
    """Smallest p (dividing rows) so the packed output last dim is a multiple of 128."""
    w_out1 = s * s * w
    if w_out1 % 128 == 0:
        return 1
    for cand in range(2, rows + 1):
        if rows % cand:
            continue
        if cand * w > 512 or cand * w_out1 > 2048:   # keep K / N / M' size sane
            break
        if (cand * w_out1) % 128 == 0:
            return cand
    return 1   # fall back: correct, just lane-masked stores


def _row_tile(n_rows, bytes_per_row):
    """Row tile: biggest that fits a 16 MiB double-buffer budget, cap 1024,
    and at least 2 grid steps so v7x's two TensorCores both get work."""
    budget = 16 * 1024 * 1024
    cap = min(1024, budget // max(1, bytes_per_row))
    cap = max(8, (cap // 8) * 8)
    if n_rows > 16:
        half = (((n_rows + 1) // 2 + 7) // 8) * 8
        cap = min(cap, half)
    return n_rows if n_rows <= cap else cap


def _replication_matrix(k_in, w, s, p):
    """Block-diagonal one-hot M' (p*W, p*s*s*W): column k of packed-output pulls
    input column (k // (s*s*W))*W + ((k % (s*s*W)) % (W*s)) // s."""
    w_out1 = s * s * w
    n_out = p * w_out1
    col = np.arange(n_out)
    src = (col // w_out1) * w + ((col % w_out1) % (w * s)) // s
    m_np = src[None, :] == np.arange(k_in)[:, None]
    return jnp.asarray(m_np, dtype=jnp.bfloat16)     # 0/1 exact in bf16


@functools.partial(jax.jit, static_argnames="stride")
def upsample_nearest(x, stride=2):
    """NCHW nearest-neighbour upsample by `stride` (torch `Upsample` semantics)."""
    assert x.ndim == 4
    s = int(stride)
    if s == 1:
        return x
    b, c, h, w = (int(d) for d in x.shape)
    rows = b * c * h
    w_out1 = s * s * w
    orig_dtype = x.dtype

    # dtype routing: bf16 -> single-pass; f32/f16 -> exact 3-pass split.
    if orig_dtype == jnp.bfloat16:
        compute_dtype, out_dtype, n_passes = jnp.bfloat16, orig_dtype, 1
    elif orig_dtype == jnp.float32 or orig_dtype == jnp.float16:
        compute_dtype, out_dtype, n_passes = jnp.float32, orig_dtype, 3
    else:
        # TODO(synk): non-float dtypes take the f32 path (exact only for |x| < 2^24)
        # and are cast back outside the kernel; never hit in AlphaPose.
        compute_dtype, out_dtype, n_passes = jnp.float32, jnp.float32, 3

    # Row packing so the output last dim is a multiple of 128 (lane-dense stores).
    p = _pack_factor(rows, w, s)
    rows_p = rows // p
    k_in = p * w
    n_out = p * w_out1

    x2 = x.astype(compute_dtype).reshape(rows_p, k_in)      # pure reshape
    m = _replication_matrix(k_in, w, s, p)                   # baked constant

    in_b = jnp.dtype(compute_dtype).itemsize
    out_b = jnp.dtype(out_dtype).itemsize
    bytes_per_row = 2 * (k_in * in_b + n_out * out_b)        # double-buffered
    tm = _row_tile(rows_p, bytes_per_row)
    grid = (pl.cdiv(rows_p, tm),)

    m_bytes = k_in * n_out * 2
    vmem_need = tm * bytes_per_row + 2 * m_bytes
    vmem_limit = int(min(32 * 1024 * 1024, vmem_need + 8 * 1024 * 1024))

    out = pl.pallas_call(
        functools.partial(_upsample_kernel, n_passes=n_passes),
        out_shape=jax.ShapeDtypeStruct((rows_p, n_out), out_dtype),
        grid_spec=pltpu.PrefetchScalarGridSpec(
            num_scalar_prefetch=0,
            grid=grid,
            in_specs=[
                pl.BlockSpec((tm, k_in), lambda i: (i, 0)),
                pl.BlockSpec((k_in, n_out), lambda i: (0, 0)),  # constant: DMA'd once
            ],
            out_specs=pl.BlockSpec((tm, n_out), lambda i: (i, 0)),
        ),
        compiler_params=pltpu.CompilerParams(
            dimension_semantics=("parallel",),   # v7x: shard row tiles over 2 TCs
            vmem_limit_bytes=vmem_limit,
        ),
    )(x2, m)

    out = out.reshape(b, c, h * s, w * s)
    if out.dtype != orig_dtype:                  # only the non-float fallback path
        out = out.astype(orig_dtype)
    return out


class Upsample:
    """Pallas-TPU drop-in for the PyTorch `Upsample(stride)` module."""

    def __init__(self, stride=2):
        self.stride = stride

    def __call__(self, x):
        return upsample_nearest(x, stride=self.stride)


def _reference(x, s):
    return jnp.repeat(jnp.repeat(x, s, axis=2), s, axis=3)


if __name__ == "__main__":
    up = Upsample(stride=2)

    # Primary case: small NCHW f32 input matching the module's expected usage.
    # (W=16, s=2 -> row packing p=2 gives a 128-lane-dense output, grid of 2.)
    x = jax.random.normal(jax.random.PRNGKey(0), (2, 4, 16, 16), jnp.float32)
    y = jax.block_until_ready(up(x))
    assert y.shape == (2, 4, 32, 32), y.shape
    assert bool(jnp.array_equal(y, _reference(x, 2)))

    # bf16 fast path: dtype-preserving output, single MXU pass, bit-exact.
    xb = x.astype(jnp.bfloat16)
    yb = jax.block_until_ready(up(xb))
    assert yb.dtype == jnp.bfloat16 and yb.shape == (2, 4, 32, 32)
    assert bool(jnp.array_equal(yb, _reference(xb, 2)))

    # Larger case: multi-step grid, already lane-dense (s*s*W = 128), no packing.
    x2 = jax.random.normal(jax.random.PRNGKey(1), (2, 8, 64, 32), jnp.float32)
    y2 = jax.block_until_ready(upsample_nearest(x2, stride=2))
    assert y2.shape == (2, 8, 128, 64), y2.shape
    assert bool(jnp.array_equal(y2, _reference(x2, 2)))

    # Non-power-of-two stride with heavy packing (p = 8).
    x3 = jax.random.normal(jax.random.PRNGKey(2), (1, 2, 8, 16), jnp.float32)
    y3 = jax.block_until_ready(upsample_nearest(x3, stride=3))
    assert y3.shape == (1, 2, 24, 48), y3.shape
    assert bool(jnp.array_equal(y3, _reference(x3, 3)))

    print("KERNEL_OK")
</pallas_src>

<mosaic_0001>
module attributes {stable_mosaic.version = 11 : i64} {
  func.func @_upsample_kernel(%arg0: i32, %arg1: memref<32x32xf32, #tpu.memory_space<vmem>>, %arg2: memref<32x128xbf16, #tpu.memory_space<vmem>>, %arg3: memref<32x128xf32, #tpu.memory_space<vmem>>) attributes {dimension_semantics = [#tpu.dimension_semantics<parallel>], iteration_bounds = array<i64: 2>, scalar_prefetch = 0 : i64, scratch_operands = 0 : i64, tpu.core_type = #tpu.core_type<tc>, window_params = [{transform_indices = @transform_0, window_bounds = array<i64: 32, 32>}, {pipeline_mode = #tpu.pipeline_mode<synchronous>, transform_indices = @transform_1, window_bounds = array<i64: 32, 128>}, {transform_indices = @transform_2, window_bounds = array<i64: 32, 128>}]} {
    %c0 = arith.constant 0 : index
    %c0_0 = arith.constant 0 : index
    %0 = vector.load %arg2[%c0, %c0_0] : memref<32x128xbf16, #tpu.memory_space<vmem>>, vector<32x128xbf16>
    %c0_1 = arith.constant 0 : index
    %c0_2 = arith.constant 0 : index
    %1 = vector.load %arg1[%c0_1, %c0_2] : memref<32x32xf32, #tpu.memory_space<vmem>>, vector<32x32xf32>
    %2 = tpu.bitcast %1 : vector<32x32xf32> -> vector<32x32xi32>
    %c-65536_i32 = arith.constant -65536 : i32
    %3 = vector.broadcast %c-65536_i32 : i32 to vector<32x32xi32>
    %4 = arith.andi %2, %3 : vector<32x32xi32>
    %5 = tpu.bitcast %4 : vector<32x32xi32> -> vector<32x32xf32>
    %6 = arith.subf %1, %5 : vector<32x32xf32>
    %7 = tpu.bitcast %6 : vector<32x32xf32> -> vector<32x32xi32>
    %c-65536_i32_3 = arith.constant -65536 : i32
    %8 = vector.broadcast %c-65536_i32_3 : i32 to vector<32x32xi32>
    %9 = arith.andi %7, %8 : vector<32x32xi32>
    %10 = tpu.bitcast %9 : vector<32x32xi32> -> vector<32x32xf32>
    %11 = arith.subf %6, %10 : vector<32x32xf32>
    %12 = arith.truncf %5 : vector<32x32xf32> to vector<32x32xbf16>
    %cst = arith.constant dense<0.000000e+00> : vector<32x128xf32>
    %13 = tpu.matmul %12, %0, %cst {dimension_numbers = #tpu.dot_dimension_numbers<[1], [0], [0], [1], [0, 0, 1, 1], [], []>} : vector<32x32xbf16>, vector<32x128xbf16>, vector<32x128xf32> -> vector<32x128xf32>
    %14 = arith.truncf %10 : vector<32x32xf32> to vector<32x32xbf16>
    %cst_4 = arith.constant dense<0.000000e+00> : vector<32x128xf32>
    %15 = tpu.matmul %14, %0, %cst_4 {dimension_numbers = #tpu.dot_dimension_numbers<[1], [0], [0], [1], [0, 0, 1, 1], [], []>} : vector<32x32xbf16>, vector<32x128xbf16>, vector<32x128xf32> -> vector<32x128xf32>
    %16 = arith.addf %13, %15 : vector<32x128xf32>
    %17 = arith.truncf %11 : vector<32x32xf32> to vector<32x32xbf16>
    %cst_5 = arith.constant dense<0.000000e+00> : vector<32x128xf32>
    %18 = tpu.matmul %17, %0, %cst_5 {dimension_numbers = #tpu.dot_dimension_numbers<[1], [0], [0], [1], [0, 0, 1, 1], [], []>} : vector<32x32xbf16>, vector<32x128xbf16>, vector<32x128xf32> -> vector<32x128xf32>
    %19 = arith.addf %16, %18 : vector<32x128xf32>
    %c0_6 = arith.constant 0 : index
    %c0_7 = arith.constant 0 : index
    %20 = vector.load %arg3[%c0_6, %c0_7] : memref<32x128xf32, #tpu.memory_space<vmem>>, vector<32x128xf32>
    tpu.vector_store %arg3[%c0_6, %c0_7], %19 {strides = array<i32>} : memref<32x128xf32, #tpu.memory_space<vmem>>, vector<32x128xf32>,
    return
  }
  func.func @transform_0(%arg0: i32) -> (i32, i32) {
    %c0_i32 = arith.constant 0 : i32
    %c0_i32_0 = arith.constant 0 : i32
    return %arg0, %c0_i32 : i32, i32
  }
  func.func @transform_1(%arg0: i32) -> (i32, i32) {
    %c0_i32 = arith.constant 0 : i32
    %c0_i32_0 = arith.constant 0 : i32
    %c0_i32_1 = arith.constant 0 : i32
    return %c0_i32, %c0_i32_0 : i32, i32
  }
  func.func @transform_2(%arg0: i32) -> (i32, i32) {
    %c0_i32 = arith.constant 0 : i32
    %c0_i32_0 = arith.constant 0 : i32
    return %arg0, %c0_i32 : i32, i32
  }
}

</mosaic_0001>

<llo_original>
// kernel: upsample_nearest.1
$region0: #{upsample_nearest.1}
  #allocation0 [shape = 'u32[]', space=smem, size = 0x4, offset = 0x4, fixed_abs, tag = 'smem constant byte address 0x4 - core index']
  #allocation1 [shape = 'u32[144,128]{1,0:T(1,128)}', space=vmem, size = 0x12000, scoped, tag = 'internal scratch']
  %s0 = inlined_call_operand.vmem [shape: f32[64,32], index: 0, kind: input, shape index: {}]
  %s1 = inlined_call_operand.vmem [shape: bf16[32,128], index: 1, kind: input, shape index: {}]
  %s2 = inlined_call_operand.vmem [shape: f32[64,128], index: 2, kind: output, shape index: {}]
  %s3 = sld [smem:[#allocation0]]
  $region41: #{upsample_nearest.1} parent=0
    _
  %s5 = ssub.s32 1, %s3
  %s6 = scalar_select 0, %s5, %s3
  loop: start=0, step=1, limit=4
  $region2: #{upsample_nearest.1} parent=0 // loop_pre_header
    _
  $region3: #{upsample_nearest.1} parent=0 // loop_header
    %s8 = sphi 0, %s12
    %p9 = scmp.ge.s32.totalorder %s8, 4
    %s18 = sphi 0, %s20
    %s21 = sphi 0, %s18
    %s22 = sphi 0, %s21
    %s38 = sphi 0, %s22
    %s42 = sphi 0, %s42
    %s44 = sphi 0, %s42
    %s45 = sphi 0, %s44
    %s59 = sphi 0, %s45
    %s65 = sphi 0, %s67
    %s68 = sphi 0, %s65
    %s69 = sphi 0, %s68
    %s85 = sphi 0, %s69
  $region4: #{upsample_nearest.1} parent=0 // loop_header_branch
    %11 = sbr.rel (%p9) target = $region8
  $region5: #{upsample_nearest.1} parent=0 // loop_body
    %s13 = ssub.s32 %s8, 1
    %s14 = ssub.s32 %s8, 2
    %s15 = sadd.s32 %s8, 1
    %s16 = ssub.s32 %s8, %s15
    %p17 = scmp.eq.s32.totalorder %s16, 0
    %s19 = sadd.s32 %s18, 1
    %s20 = scalar_select %p17, %s18, %s19
    %p23 = pneg %p17
    %p24 = scmp.eq.s32.totalorder %s8, 1
    %p25 = por %p23, %p24
    %p26 = scmp.ne.s32.totalorder %s18, %s21
    %p27 = scmp.eq.s32.totalorder %s8, 0
    %p28 = por %p26, %p27
    %p29 = scmp.ne.s32.totalorder %s18, %s21
    %p30 = scmp.eq.s32.totalorder %s13, 1
    %p31 = por %p29, %p30
    %p32 = scmp.ne.s32.totalorder %s21, %s22
    %p33 = scmp.eq.s32.totalorder %s13, 0
    %p34 = por %p32, %p33
    %p35 = scmp.ne.s32.totalorder %s21, %s22
    %p36 = scmp.eq.s32.totalorder %s14, 1
    %p37 = por %p35, %p36
    %p39 = scmp.ne.s32.totalorder %s22, %s38
    %p40 = scmp.eq.s32.totalorder %s14, 0
    %p41 = por %p39, %p40
    %s43 = sadd.s32 %s42, 1
    %p46 = scmp.eq.s32.totalorder %s8, 1
    %p47 = scmp.ne.s32.totalorder %s42, %s44
    %p48 = scmp.eq.s32.totalorder %s8, 0
    %p49 = por %p47, %p48
    %p50 = scmp.ne.s32.totalorder %s42, %s44
    %p51 = scmp.eq.s32.totalorder %s13, 1
    %p52 = por %p50, %p51
    %p53 = scmp.ne.s32.totalorder %s44, %s45
    %p54 = scmp.eq.s32.totalorder %s13, 0
    %p55 = por %p53, %p54
    %p56 = scmp.ne.s32.totalorder %s44, %s45
    %p57 = scmp.eq.s32.totalorder %s14, 1
    %p58 = por %p56, %p57
    %p60 = scmp.ne.s32.totalorder %s45, %s59
    %p61 = scmp.eq.s32.totalorder %s14, 0
    %p62 = por %p60, %p61
    %s63 = ssub.s32 %s8, %s15
    %p64 = scmp.eq.s32.totalorder %s63, 0
    %s66 = sadd.s32 %s65, 1
    %s67 = scalar_select %p64, %s65, %s66
    %p70 = pneg %p64
    %p71 = scmp.eq.s32.totalorder %s8, 1
    %p72 = por %p70, %p71
    %p73 = scmp.ne.s32.totalorder %s65, %s68
    %p74 = scmp.eq.s32.totalorder %s8, 0
    %p75 = por %p73, %p74
    %p76 = scmp.ne.s32.totalorder %s65, %s68
    %p77 = scmp.eq.s32.totalorder %s13, 1
    %p78 = por %p76, %p77
    %p79 = scmp.ne.s32.totalorder %s68, %s69
    %p80 = scmp.eq.s32.totalorder %s13, 0
    %p81 = por %p79, %p80
    %p82 = scmp.ne.s32.totalorder %s68, %s69
    %p83 = scmp.eq.s32.totalorder %s14, 1
    %p84 = por %p82, %p83
    %p86 = scmp.ne.s32.totalorder %s69, %s85
    %p87 = scmp.eq.s32.totalorder %s14, 0
    %p88 = por %p86, %p87
    %p89 = scmp.le.s32.totalorder 1, %s8
    %p90 = scmp.lt.s32.totalorder %s8, 3
    %p91 = pnand %p89, %p90
    %p92 = pneg %p91
    // Predicated region
    $region9: #{upsample_nearest.1} parent=5 // pred_check
      _
    $region10: #{upsample_nearest.1} parent=5 // pred_check_branch
      %94 = sbr.rel (%p91) target = $region12
    $region11: #{upsample_nearest.1} parent=5 // pred_region
      %s95 = ssub.s32 %s8, 1
      // Predicated region
      $region13: #{upsample_nearest.1} parent=11 // pred_check
        %p96 = pneg %p55
      $region14: #{upsample_nearest.1} parent=11 // pred_check_branch
        %98 = sbr.rel (%p96) target = $region16
      $region15: #{upsample_nearest.1} parent=11 // pred_region
        _
      $region16: #{upsample_nearest.1} parent=11 // pred_fallthru
        _
    $region12: #{upsample_nearest.1} parent=5 // pred_fallthru
      _
    %p99 = scmp.lt.s32.totalorder %s8, 2
    // Predicated region
    $region17: #{upsample_nearest.1} parent=5 // pred_check
      %p100 = pneg %p99
    $region18: #{upsample_nearest.1} parent=5 // pred_check_branch
      %102 = sbr.rel (%p100) target = $region20
    $region19: #{upsample_nearest.1} parent=5 // pred_region
      // Predicated region
      $region21: #{upsample_nearest.1} parent=19 // pred_check
        %p103 = pneg %p28
      $region22: #{upsample_nearest.1} parent=19 // pred_check_branch
        %105 = sbr.rel (%p103) target = $region24
      $region23: #{upsample_nearest.1} parent=19 // pred_region
        %s106 = smul.u32 4, %s8
        %p107 = scmp.lt.s32.totalorder %s106, 7
        %s108 = scalar_select %p107, %s106, 7
        %s109 = smul.addr %s108, 8
        %s110 = scalar_lea.vmem %s0, %s109
        %s111 = smul.u32 4, %s8
      $region24: #{upsample_nearest.1} parent=19 // pred_fallthru
        _
    $region20: #{upsample_nearest.1} parent=5 // pred_fallthru
      _
    %p112 = scmp.le.s32.totalorder 1, %s8
    %p113 = scmp.lt.s32.totalorder %s8, 3
    %p114 = pnand %p112, %p113
    %p115 = pneg %p114
    // Predicated region
    $region25: #{upsample_nearest.1} parent=5 // pred_check
      _
    $region26: #{upsample_nearest.1} parent=5 // pred_check_branch
      %117 = sbr.rel (%p114) target = $region28
    $region27: #{upsample_nearest.1} parent=5 // pred_region
      %s118 = ssub.s32 %s8, 1
      %s119 = smul.u32 4, %s13
      %p120 = scmp.lt.s32.totalorder %s119, 7
      %s121 = scalar_select %p120, %s119, 7
      %s122 = smul.addr %s121, 8
      %s123 = scalar_lea.vmem %s0, %s122
      %p124 = pneg %p34
      %p125 = pneg %p31
      %p126 = pneg %p55
      %p127 = pneg %p52
      %p128 = pneg %p81
      %p129 = pneg %p78
      %s130 = smul.u32 4, %s13
      %p131 = scmp.lt.s32.totalorder %s130, 7
      %s132 = scalar_select %p131, %s130, 7
      %s133 = smul.addr %s132, 8
      %s134 = scalar_lea.vmem %s2, %s133
      %s135 = smul.u32 4, %s13
      %p136 = scmp.lt.s32.totalorder %s135, 7
      %s137 = scalar_select %p136, %s135, 7
      %s138 = smul.addr %s137, 8
      %s139 = scalar_lea.vmem %s0, %s138
      %s140 = smul.u32 4, %s13
      %s141 = smul.u32 4, %s13
      %p142 = scmp.lt.s32.totalorder %s141, 7
      %s143 = scalar_select %p142, %s141, 7
      %s144 = smul.addr %s143, 8
      %s145 = scalar_lea.vmem %s2, %s144
      %s146 = smul.u32 4, %s13
      %v148 = vld [vmem:[%s1] sm:$0xf]
      %v149 = vld [vmem:[%s1 + $0x4] sm:$0xf]
      %v150 = vld [vmem:[%s1 + $0x8] sm:$0xf]
      %v151 = vld [vmem:[%s1 + $0xc] sm:$0xf]
      %v152 = vld [vmem:[%s139] sm:$0xff]
      %v153 = vld [vmem:[%s139 + $0x8] sm:$0xff]
      %v154 = vld [vmem:[%s139 + $0x10] sm:$0xff]
      %v155 = vld [vmem:[%s139 + $0x18] sm:$0xff]
      %v160 = vand.u32 %v152, 4294901760
      %v161 = vand.u32 %v153, 4294901760
      %v162 = vand.u32 %v154, 4294901760
      %v163 = vand.u32 %v155, 4294901760
      %v168 = vsub.f32 %v152, %v160
      %v169 = vsub.f32 %v153, %v161
      %v170 = vsub.f32 %v154, %v162
      %v171 = vsub.f32 %v155, %v163
      %v176 = vand.u32 %v168, 4294901760
      %v177 = vand.u32 %v169, 4294901760
      %v178 = vand.u32 %v170, 4294901760
      %v179 = vand.u32 %v171, 4294901760
      %v184 = vsub.f32 %v168, %v176
      %v185 = vsub.f32 %v169, %v177
      %v186 = vsub.f32 %v170, %v178
      %v187 = vsub.f32 %v171, %v179
      %v188 = vpack.c.bf16 %v161, %v160
      %v189 = vpack.c.bf16 %v163, %v162
      %v190 = vpack.c.bf16 %v177, %v176
      %v191 = vpack.c.bf16 %v179, %v178
      %v196 = vunpack.c.l.b16 %v148
      %v197 = vunpack.c.l.b16 %v149
      %v198 = vunpack.c.l.b16 %v150
      %v199 = vunpack.c.l.b16 %v151
      %v200 = vpack.c.b16 %v197, %v196
      %v201 = vpack.c.b16 %v199, %v198
      %vm204 = vcmask 261120
      %v206 = vsel %vm204, %v190, 0
      %v209 = vsel %vm204, %v191, 0
      %211 = vmatprep.subr.bf16.mxu0 0
      %212 = vmatpush1.bf16.msra.mxu0 0
      %213 = vmatprep.subr.bf16.mxu0 0
      %214 = vmatpush1.bf16.msra.mxu0 0
      %215 = vmatprep.subr.bf16.mxu0 0
      %216 = vmatpush1.bf16.msra.mxu0 0
      %217 = vmatprep.subr.bf16.mxu0 0
      %218 = vmatpush1.bf16.msra.mxu0 0
      %219 = vmatprep.subr.bf16.mxu0 0
      %220 = vmatpush1.bf16.msra.mxu0 0
      %221 = vmatprep.subr.bf16.mxu0 0
      %222 = vmatpush1.bf16.msra.mxu0 0
      %223 = vmatprep.subr.bf16.mxu0 0
      %224 = vmatpush1.bf16.msra.mxu0 %v201
      %225 = vmatprep.subr.bf16.mxu0 0
      %226 = vmatpush1.bf16.msra.mxu0 %v200
      %227 = vmatprep.subr.bf16.mxu0 0
      %228 = vmatpush2.bf16.msra.mxu0 0
      %229 = vmatprep.subr.bf16.mxu0 0
      %230 = vmatpush2.bf16.msra.mxu0 0
      %231 = vmatprep.subr.bf16.mxu0 0
      %232 = vmatpush2.bf16.msra.mxu0 0
      %233 = vmatprep.subr.bf16.mxu0 0
      %234 = vmatpush2.bf16.msra.mxu0 0
      %235 = vmatprep.subr.bf16.mxu0 0
      %236 = vmatpush2.bf16.msra.mxu0 0
      %237 = vmatprep.subr.bf16.mxu0 0
      %238 = vmatpush2.bf16.msra.mxu0 0
      %239 = vmatprep.subr.bf16.mxu0 0
      %240 = vmatpush2.bf16.msra.mxu0 0
      %241 = vmatprep.subr.bf16.mxu0 0
      %242 = vmatpush2.bf16.msra.mxu0 0
      %243 = vmatprep.mubr.bf16.mxu0 0
      %244 = vmatmul.mubr.bf16.gmra.mxu0 %v206
      %v245 = vpop.f32.mrf.mxu0
      %v246 = vadd.f32 0.0, %v245
      %v247 = vpop.f32.mrf.mxu0
      %v248 = vpop.f32.mrf.mxu0
      %v249 = vadd.f32 0.0, %v248
      %v250 = vpop.f32.mrf.mxu0
      %251 = vmatprep.mubr.bf16.mxu0 0
      %252 = vmatmul.mubr.bf16.gmra.mxu0 %v209
      %v253 = vpop.f32.mrf.mxu0
      %v254 = vadd.f32 0.0, %v253
      %v255 = vpop.f32.mrf.mxu0
      %v256 = vpop.f32.mrf.mxu0
      %v257 = vadd.f32 0.0, %v256
      %v258 = vpop.f32.mrf.mxu0
      %259 = vdwg.mxu0
      %v261 = vsel %vm204, %v188, 0
      %v264 = vsel %vm204, %v189, 0
      %266 = vmatprep.subr.bf16.mxu0 0
      %267 = vmatpush1.bf16.msra.mxu0 0
      %268 = vmatprep.subr.bf16.mxu0 0
      %269 = vmatpush1.bf16.msra.mxu0 0
      %270 = vmatprep.subr.bf16.mxu0 0
      %271 = vmatpush1.bf16.msra.mxu0 0
      %272 = vmatprep.subr.bf16.mxu0 0
      %273 = vmatpush1.bf16.msra.mxu0 0
      %274 = vmatprep.subr.bf16.mxu0 0
      %275 = vmatpush1.bf16.msra.mxu0 0
      %276 = vmatprep.subr.bf16.mxu0 0
      %277 = vmatpush1.bf16.msra.mxu0 0
      %278 = vmatprep.subr.bf16.mxu0 0
      %279 = vmatpush1.bf16.msra.mxu0 %v201
      %280 = vmatprep.subr.bf16.mxu0 0
      %281 = vmatpush1.bf16.msra.mxu0 %v200
      %282 = vmatprep.subr.bf16.mxu0 0
      %283 = vmatpush2.bf16.msra.mxu0 0
      %284 = vmatprep.subr.bf16.mxu0 0
      %285 = vmatpush2.bf16.msra.mxu0 0
      %286 = vmatprep.subr.bf16.mxu0 0
      %287 = vmatpush2.bf16.msra.mxu0 0
      %288 = vmatprep.subr.bf16.mxu0 0
      %289 = vmatpush2.bf16.msra.mxu0 0
      %290 = vmatprep.subr.bf16.mxu0 0
      %291 = vmatpush2.bf16.msra.mxu0 0
      %292 = vmatprep.subr.bf16.mxu0 0
      %293 = vmatpush2.bf16.msra.mxu0 0
      %294 = vmatprep.subr.bf16.mxu0 0
      %295 = vmatpush2.bf16.msra.mxu0 0
      %296 = vmatprep.subr.bf16.mxu0 0
      %297 = vmatpush2.bf16.msra.mxu0 0
      %298 = vmatprep.mubr.bf16.mxu0 0
      %299 = vmatmul.mubr.bf16.gmra.mxu0 %v261
      %v300 = vpop.f32.mrf.mxu0
      %v301 = vadd.f32 %v246, %v300
      %v302 = vpop.f32.mrf.mxu0
      %v303 = vpop.f32.mrf.mxu0
      %v304 = vadd.f32 %v249, %v303
      %v305 = vpop.f32.mrf.mxu0
      %306 = vmatprep.mubr.bf16.mxu0 0
      %307 = vmatmul.mubr.bf16.gmra.mxu0 %v264
      %v308 = vpop.f32.mrf.mxu0
      %v309 = vadd.f32 %v254, %v308
      %v310 = vpop.f32.mrf.mxu0
      %v311 = vpop.f32.mrf.mxu0
      %v312 = vadd.f32 %v257, %v311
      %v313 = vpop.f32.mrf.mxu0
      %314 = vdwg.mxu0
      %v315 = vpack.c.bf16 %v185, %v184
      %v316 = vpack.c.bf16 %v187, %v186
      %v318 = vsel %vm204, %v315, 0
      %v321 = vsel %vm204, %v316, 0
      %323 = vmatprep.subr.bf16.mxu0 0
      %324 = vmatpush1.bf16.msra.mxu0 0
      %325 = vmatprep.subr.bf16.mxu0 0
      %326 = vmatpush1.bf16.msra.mxu0 0
      %327 = vmatprep.subr.bf16.mxu0 0
      %328 = vmatpush1.bf16.msra.mxu0 0
      %329 = vmatprep.subr.bf16.mxu0 0
      %330 = vmatpush1.bf16.msra.mxu0 0
      %331 = vmatprep.subr.bf16.mxu0 0
      %332 = vmatpush1.bf16.msra.mxu0 0
      %333 = vmatprep.subr.bf16.mxu0 0
      %334 = vmatpush1.bf16.msra.mxu0 0
      %335 = vmatprep.subr.bf16.mxu0 0
      %336 = vmatpush1.bf16.msra.mxu0 %v201
      %337 = vmatprep.subr.bf16.mxu0 0
      %338 = vmatpush1.bf16.msra.mxu0 %v200
      %339 = vmatprep.subr.bf16.mxu0 0
      %340 = vmatpush2.bf16.msra.mxu0 0
      %341 = vmatprep.subr.bf16.mxu0 0
      %342 = vmatpush2.bf16.msra.mxu0 0
      %343 = vmatprep.subr.bf16.mxu0 0
      %344 = vmatpush2.bf16.msra.mxu0 0
      %345 = vmatprep.subr.bf16.mxu0 0
      %346 = vmatpush2.bf16.msra.mxu0 0
      %347 = vmatprep.subr.bf16.mxu0 0
      %348 = vmatpush2.bf16.msra.mxu0 0
      %349 = vmatprep.subr.bf16.mxu0 0
      %350 = vmatpush2.bf16.msra.mxu0 0
      %351 = vmatprep.subr.bf16.mxu0 0
      %352 = vmatpush2.bf16.msra.mxu0 0
      %353 = vmatprep.subr.bf16.mxu0 0
      %354 = vmatpush2.bf16.msra.mxu0 0
      %355 = vmatprep.mubr.bf16.mxu0 0
      %356 = vmatmul.mubr.bf16.gmra.mxu0 %v318
      %v357 = vpop.f32.mrf.mxu0
      %v358 = vadd.f32 0.0, %v357
      %v359 = vpop.f32.mrf.mxu0
      %v360 = vpop.f32.mrf.mxu0
      %v361 = vadd.f32 0.0, %v360
      %v362 = vpop.f32.mrf.mxu0
      %363 = vmatprep.mubr.bf16.mxu0 0
      %364 = vmatmul.mubr.bf16.gmra.mxu0 %v321
      %v365 = vpop.f32.mrf.mxu0
      %v366 = vadd.f32 0.0, %v365
      %v367 = vpop.f32.mrf.mxu0
      %v368 = vpop.f32.mrf.mxu0
      %v369 = vadd.f32 0.0, %v368
      %v370 = vpop.f32.mrf.mxu0
      %371 = vdwg.mxu0
      %v372 = vadd.f32 %v301, %v358
      %v373 = vadd.f32 %v304, %v361
      %v374 = vadd.f32 %v309, %v366
      %v375 = vadd.f32 %v312, %v369
      %376 = vst [vmem:[%s145] sm:$0xff] %v372
      %377 = vst [vmem:[%s145 + $0x8] sm:$0xff] %v373
      %378 = vst [vmem:[%s145 + $0x10] sm:$0xff] %v374
      %379 = vst [vmem:[%s145 + $0x18] sm:$0xff] %v375
      %s380 = smul.u32 4, %s13
      %p381 = scmp.lt.s32.totalorder %s380, 7
      %s382 = scalar_select %p381, %s380, 7
      %s383 = smul.addr %s382, 8
      %s384 = scalar_lea.vmem %s2, %s383
      // Predicated region
      $region29: #{upsample_nearest.1} parent=27 // pred_check
        %p385 = pneg %p78
      $region30: #{upsample_nearest.1} parent=27 // pred_check_branch
        %387 = sbr.rel (%p385) target = $region32
      $region31: #{upsample_nearest.1} parent=27 // pred_region
        %s388 = smul.u32 4, %s13
      $region32: #{upsample_nearest.1} parent=27 // pred_fallthru
        _
    $region28: #{upsample_nearest.1} parent=5 // pred_fallthru
      _
    %p389 = scmp.le.s32.totalorder 2, %s8
    // Predicated region
    $region33: #{upsample_nearest.1} parent=5 // pred_check
      %p390 = pneg %p389
    $region34: #{upsample_nearest.1} parent=5 // pred_check_branch
      %392 = sbr.rel (%p390) target = $region36
    $region35: #{upsample_nearest.1} parent=5 // pred_region
      %s393 = ssub.s32 %s8, 2
      // Predicated region
      $region37: #{upsample_nearest.1} parent=35 // pred_check
        %p394 = pneg %p84
      $region38: #{upsample_nearest.1} parent=35 // pred_check_branch
        %396 = sbr.rel (%p394) target = $region40
      $region39: #{upsample_nearest.1} parent=35 // pred_region
        %s397 = smul.u32 4, %s14
        %p398 = scmp.lt.s32.totalorder %s397, 7
        %s399 = scalar_select %p398, %s397, 7
        %s400 = smul.addr %s399, 8
        %s401 = scalar_lea.vmem %s2, %s400
      $region40: #{upsample_nearest.1} parent=35 // pred_fallthru
        _
    $region36: #{upsample_nearest.1} parent=5 // pred_fallthru
      _
  $region6: #{upsample_nearest.1} parent=0 // loop_footer
    %s12 = sadd.s32 1, %s8
  $region7: #{upsample_nearest.1} parent=0 // loop_footer_branch
    %7 = sbr.rel target = $region3
  $region8: #{upsample_nearest.1} parent=0 // loop_exit
    _

</llo_original>
